<compile_context>
chip_gen: v5e
topology: v5e:2x2
jax: 0.10.0
libtpu: 0.0.40
codegen_flags: <defaults>
</compile_context>

<pallas_src>
import functools

import jax
import jax.numpy as jnp
from jax.experimental import pallas as pl
from jax.experimental.pallas import tpu as pltpu


# --------------------------------------------------------------------------
# Kernels
# --------------------------------------------------------------------------
def se_fused_kernel(x_ref, w1_ref, b1_ref, w2_ref, b2_ref, o_ref, *, inv_n):
    """Single-pass SE: pool -> FC -> ReLU -> FC -> sigmoid -> scale on a
    VMEM-resident (C, N) slab.  x is read from HBM exactly once."""
    x = x_ref[0].astype(jnp.float32)                           # (C, N)
    mean = jnp.sum(x, axis=-1, keepdims=True) * inv_n          # (C, 1)
    # fc1: (Cr, C) @ (C, 1) -> (Cr, 1)   (PyTorch (out, in) layout, no transpose)
    h = jnp.dot(w1_ref[...], mean,
                preferred_element_type=jnp.float32) + b1_ref[...]
    h = jnp.maximum(h, 0.0)
    # fc2: (C, Cr) @ (Cr, 1) -> (C, 1)
    z = jnp.dot(w2_ref[...], h,
                preferred_element_type=jnp.float32) + b2_ref[...]
    gate = pl.reciprocal(1.0 + jnp.exp(-z), approx=False)      # exact sigmoid
    o_ref[0] = (x * gate).astype(o_ref.dtype)


def se_pool_kernel(x_ref, w1_ref, b1_ref, w2_ref, b2_ref, y_ref, acc_ref,
                   *, n_total, inv_n, tile_n):
    """Streaming pass 1: lane-dense per-channel sums + FC stack epilogue."""
    k = pl.program_id(1)

    @pl.when(k == 0)
    def _():
        acc_ref[...] = jnp.zeros_like(acc_ref)

    x = x_ref[0].astype(jnp.float32)                           # (C, tile_n)
    c = x.shape[0]
    # Mask lanes past N (only matters on the partial last tile; cheap VPU
    # select hidden under the HBM stream).
    pos = k * tile_n + jax.lax.broadcasted_iota(jnp.int32, (c, tile_n), 1)
    x = jnp.where(pos < n_total, x, 0.0)
    # Lane-dense accumulation: 128-wide VPU adds into the (C, 128) scratch;
    # the cross-lane (XLU) reduce is deferred to the epilogue.
    for j in range(tile_n // 128):
        acc_ref[...] += x[:, j * 128:(j + 1) * 128]

    @pl.when(k == pl.num_programs(1) - 1)
    def _():
        mean = jnp.sum(acc_ref[...], axis=-1, keepdims=True) * inv_n   # (C, 1)
        h = jnp.dot(w1_ref[...], mean,
                    preferred_element_type=jnp.float32) + b1_ref[...]
        h = jnp.maximum(h, 0.0)
        z = jnp.dot(w2_ref[...], h,
                    preferred_element_type=jnp.float32) + b2_ref[...]
        y_ref[0] = pl.reciprocal(1.0 + jnp.exp(-z), approx=False).astype(y_ref.dtype)


def se_scale_kernel(y_ref, x_ref, o_ref):
    """Streaming pass 2: out = x * gate, broadcasting (C, 1) along lanes."""
    o_ref[0] = (x_ref[0].astype(jnp.float32) * y_ref[0]).astype(o_ref.dtype)


# --------------------------------------------------------------------------
# Wrapper
# --------------------------------------------------------------------------
def _vmem_budget_bytes():
    """Per-generation VMEM budget (v7x has 64 MiB/TC vs 128 MiB on v5e/v6e)."""
    try:
        kind = jax.devices()[0].device_kind.lower()
    except Exception:  # pragma: no cover - defensive
        kind = ""
    if "7" in kind:
        return 48 * 1024 * 1024
    return 96 * 1024 * 1024


def se_layer(x, w1, b1, w2, b2, *, tn=None, force_streaming=False):
    """x: (B, C, H, W); w1: (C//r, C); b1: (C//r,); w2: (C, C//r); b2: (C,)."""
    B, C, H, W = x.shape
    Cr = w1.shape[0]
    N = H * W
    itemsize = jnp.dtype(x.dtype).itemsize

    x_flat = x.reshape(B, C, N)                       # metadata-only reshape
    w1f = w1.astype(jnp.float32)
    w2f = w2.astype(jnp.float32)
    b1c = b1.reshape(Cr, 1).astype(jnp.float32)
    b2c = b2.reshape(C, 1).astype(jnp.float32)

    budget = _vmem_budget_bytes()
    w_bytes = (Cr * C + C * Cr + Cr + C) * 4

    # ---------------- Fused single-pass path -------------------------------
    # 2 double-buffered input blocks + 2 output blocks + f32 working copy.
    fused_bytes = 4 * C * N * itemsize + C * N * 4 + w_bytes + (1 << 20)
    if (not force_streaming) and fused_bytes <= budget:
        out_flat = pl.pallas_call(
            functools.partial(se_fused_kernel, inv_n=1.0 / N),
            out_shape=jax.ShapeDtypeStruct((B, C, N), x.dtype),
            grid_spec=pltpu.PrefetchScalarGridSpec(
                num_scalar_prefetch=0,
                grid=(B,),
                in_specs=[
                    pl.BlockSpec((1, C, N), lambda b: (b, 0, 0)),   # x slab
                    pl.BlockSpec((Cr, C), lambda b: (0, 0)),        # w1 (resident)
                    pl.BlockSpec((Cr, 1), lambda b: (0, 0)),        # b1
                    pl.BlockSpec((C, Cr), lambda b: (0, 0)),        # w2
                    pl.BlockSpec((C, 1), lambda b: (0, 0)),         # b2
                ],
                out_specs=pl.BlockSpec((1, C, N), lambda b: (b, 0, 0)),
            ),
            compiler_params=pltpu.CompilerParams(
                dimension_semantics=("parallel",),
                vmem_limit_bytes=budget),
            cost_estimate=pl.CostEstimate(
                flops=int(2 * B * C * N + 4 * B * C * Cr),
                transcendentals=int(B * C),
                bytes_accessed=int(2 * B * C * N * itemsize + w_bytes)),
        )(x_flat, w1f, b1c, w2f, b2c)
        return out_flat.reshape(B, C, H, W)

    # ---------------- Streaming two-pass fallback ---------------------------
    n128 = pl.cdiv(N, 128) * 128
    if tn is None:
        usable = max(budget - w_bytes - (2 << 20), 4 * C * 128 * itemsize)
        max_tn = usable // (4 * C * itemsize)     # pass-2: 2 in + 2 out buffers
        tn = min(2048, n128, max(128, max_tn))
    tn = max(128, min(tn, n128))
    tn = (tn // 128) * 128
    n_tiles = pl.cdiv(N, tn)

    # Pass 1: global average pool + FC/ReLU/FC/sigmoid -> (B, C, 1) gate.
    y = pl.pallas_call(
        functools.partial(se_pool_kernel, n_total=N, inv_n=1.0 / N, tile_n=tn),
        out_shape=jax.ShapeDtypeStruct((B, C, 1), jnp.float32),
        grid_spec=pltpu.PrefetchScalarGridSpec(
            num_scalar_prefetch=0,
            grid=(B, n_tiles),
            in_specs=[
                pl.BlockSpec((1, C, tn), lambda b, k: (b, 0, k)),   # x tiles
                pl.BlockSpec((Cr, C), lambda b, k: (0, 0)),         # w1 (resident)
                pl.BlockSpec((Cr, 1), lambda b, k: (0, 0)),         # b1
                pl.BlockSpec((C, Cr), lambda b, k: (0, 0)),         # w2
                pl.BlockSpec((C, 1), lambda b, k: (0, 0)),          # b2
            ],
            out_specs=pl.BlockSpec((1, C, 1), lambda b, k: (b, 0, 0)),
            scratch_shapes=[pltpu.VMEM((C, 128), jnp.float32)],     # lane-dense acc
        ),
        compiler_params=pltpu.CompilerParams(
            dimension_semantics=("parallel", "arbitrary"),
            vmem_limit_bytes=budget),
        cost_estimate=pl.CostEstimate(
            flops=int(B * C * N + 4 * B * C * Cr),
            transcendentals=int(B * C),
            bytes_accessed=int(B * C * N * itemsize + w_bytes + B * C * 4)),
    )(x_flat, w1f, b1c, w2f, b2c)

    # Pass 2: broadcast-scale x by the per-channel gate (OOB tail of the last
    # block is masked by Pallas on store; no pad / slice needed).
    out_flat = pl.pallas_call(
        se_scale_kernel,
        out_shape=jax.ShapeDtypeStruct((B, C, N), x.dtype),
        grid_spec=pltpu.PrefetchScalarGridSpec(
            num_scalar_prefetch=0,
            grid=(B, n_tiles),
            in_specs=[
                pl.BlockSpec((1, C, 1), lambda b, k: (b, 0, 0)),    # gate
                pl.BlockSpec((1, C, tn), lambda b, k: (b, 0, k)),   # x tiles
            ],
            out_specs=pl.BlockSpec((1, C, tn), lambda b, k: (b, 0, k)),
        ),
        compiler_params=pltpu.CompilerParams(
            dimension_semantics=("parallel", "parallel"),
            vmem_limit_bytes=budget),
        cost_estimate=pl.CostEstimate(
            flops=int(B * C * N),
            transcendentals=0,
            bytes_accessed=int(2 * B * C * N * itemsize + B * C * 4)),
    )(y, x_flat)

    return out_flat.reshape(B, C, H, W)


def se_reference(x, w1, b1, w2, b2):
    """Pure-JAX reference matching the PyTorch forward."""
    y = jnp.mean(x, axis=(2, 3))                        # (B, C)
    h = jnp.maximum(y @ w1.T + b1, 0.0)                 # (B, Cr)
    s = jax.nn.sigmoid(h @ w2.T + b2)                   # (B, C)
    return x * s[:, :, None, None]


if __name__ == "__main__":
    key = jax.random.PRNGKey(0)
    k1, k2, k3, k4, k5 = jax.random.split(key, 5)

    B, C, reduction = 2, 128, 16
    Cr = C // reduction

    # nn.Linear-style params in PyTorch (out_features, in_features) layout.
    w1 = jax.random.normal(k2, (Cr, C), dtype=jnp.float32) * 0.1
    b1 = jax.random.normal(k3, (Cr,), dtype=jnp.float32) * 0.1
    w2 = jax.random.normal(k4, (C, Cr), dtype=jnp.float32) * 0.1
    b2 = jax.random.normal(k5, (C,), dtype=jnp.float32) * 0.1

    # Case 1: fused single-pass path (per-batch slab fits VMEM).
    x1 = jax.random.normal(k1, (B, C, 16, 16), dtype=jnp.float32)
    out1 = jax.block_until_ready(se_layer(x1, w1, b1, w2, b2))
    ref1 = se_reference(x1, w1, b1, w2, b2)
    assert out1.shape == x1.shape
    assert jnp.allclose(out1, ref1, atol=1e-5, rtol=1e-5), "fused path mismatch"

    # Case 2: streaming two-pass path with a partial (lane-masked) last tile
    # (N = 14*14 = 196, tn = 128 -> tiles with 128 and 68 valid lanes).
    x2 = jax.random.normal(k1, (B, C, 14, 14), dtype=jnp.float32)
    out2 = jax.block_until_ready(
        se_layer(x2, w1, b1, w2, b2, tn=128, force_streaming=True))
    ref2 = se_reference(x2, w1, b1, w2, b2)
    assert out2.shape == x2.shape
    assert jnp.allclose(out2, ref2, atol=1e-5, rtol=1e-5), "streaming path mismatch"

    print("KERNEL_OK")
</pallas_src>

<mosaic_0001>
module attributes {stable_mosaic.version = 11 : i64} {
  func.func @se_fused_kernel(%arg0: i32, %arg1: memref<1x128x256xf32, #tpu.memory_space<vmem>>, %arg2: memref<8x128xf32, #tpu.memory_space<vmem>>, %arg3: memref<8x1xf32, #tpu.memory_space<vmem>>, %arg4: memref<128x8xf32, #tpu.memory_space<vmem>>, %arg5: memref<128x1xf32, #tpu.memory_space<vmem>>, %arg6: memref<1x128x256xf32, #tpu.memory_space<vmem>>) attributes {dimension_semantics = [#tpu.dimension_semantics<parallel>], iteration_bounds = array<i64: 2>, scalar_prefetch = 0 : i64, scratch_operands = 0 : i64, tpu.core_type = #tpu.core_type<tc>, window_params = [{transform_indices = @transform_0, window_bounds = array<i64: 1, 128, 256>}, {pipeline_mode = #tpu.pipeline_mode<synchronous>, transform_indices = @transform_1, window_bounds = array<i64: 8, 128>}, {pipeline_mode = #tpu.pipeline_mode<synchronous>, transform_indices = @transform_2, window_bounds = array<i64: 8, 1>}, {pipeline_mode = #tpu.pipeline_mode<synchronous>, transform_indices = @transform_3, window_bounds = array<i64: 128, 8>}, {pipeline_mode = #tpu.pipeline_mode<synchronous>, transform_indices = @transform_4, window_bounds = array<i64: 128, 1>}, {transform_indices = @transform_5, window_bounds = array<i64: 1, 128, 256>}]} {
    %c0 = arith.constant 0 : index
    %c0_0 = arith.constant 0 : index
    %c0_1 = arith.constant 0 : index
    %0 = vector.load %arg1[%c0, %c0_0, %c0_1] : memref<1x128x256xf32, #tpu.memory_space<vmem>>, vector<1x128x256xf32>
    %1 = vector.shape_cast %0 : vector<1x128x256xf32> to vector<128x256xf32>
    %cst = arith.constant dense<0.000000e+00> : vector<128xf32>
    %2 = vector.multi_reduction <add>, %1, %cst [1] : vector<128x256xf32> to vector<128xf32>
    %3 = vector.shape_cast %2 : vector<128xf32> to vector<128x1xf32>
    %cst_2 = arith.constant 3.906250e-03 : f32
    %4 = vector.broadcast %cst_2 : f32 to vector<128x1xf32>
    %5 = arith.mulf %3, %4 : vector<128x1xf32>
    %c0_3 = arith.constant 0 : index
    %c0_4 = arith.constant 0 : index
    %6 = vector.load %arg2[%c0_3, %c0_4] : memref<8x128xf32, #tpu.memory_space<vmem>>, vector<8x128xf32>
    %cst_5 = arith.constant dense<0.000000e+00> : vector<8x1xf32>
    %7 = tpu.matmul %6, %5, %cst_5 {dimension_numbers = #tpu.dot_dimension_numbers<[1], [0], [0], [1], [0, 0, 1, 1], [], []>} : vector<8x128xf32>, vector<128x1xf32>, vector<8x1xf32> -> vector<8x1xf32>
    %c0_6 = arith.constant 0 : index
    %c0_7 = arith.constant 0 : index
    %8 = vector.load %arg3[%c0_6, %c0_7] : memref<8x1xf32, #tpu.memory_space<vmem>>, vector<8x1xf32>
    %9 = arith.addf %7, %8 : vector<8x1xf32>
    %cst_8 = arith.constant 0.000000e+00 : f32
    %10 = vector.broadcast %cst_8 : f32 to vector<8x1xf32>
    %11 = arith.maximumf %9, %10 : vector<8x1xf32>
    %c0_9 = arith.constant 0 : index
    %c0_10 = arith.constant 0 : index
    %12 = vector.load %arg4[%c0_9, %c0_10] : memref<128x8xf32, #tpu.memory_space<vmem>>, vector<128x8xf32>
    %cst_11 = arith.constant dense<0.000000e+00> : vector<128x1xf32>
    %13 = tpu.matmul %12, %11, %cst_11 {dimension_numbers = #tpu.dot_dimension_numbers<[1], [0], [0], [1], [0, 0, 1, 1], [], []>} : vector<128x8xf32>, vector<8x1xf32>, vector<128x1xf32> -> vector<128x1xf32>
    %c0_12 = arith.constant 0 : index
    %c0_13 = arith.constant 0 : index
    %14 = vector.load %arg5[%c0_12, %c0_13] : memref<128x1xf32, #tpu.memory_space<vmem>>, vector<128x1xf32>
    %15 = arith.addf %13, %14 : vector<128x1xf32>
    %cst_14 = arith.constant 0.000000e+00 : f32
    %16 = vector.broadcast %cst_14 : f32 to vector<128x1xf32>
    %17 = arith.subf %16, %15 : vector<128x1xf32>
    %18 = math.exp %17 : vector<128x1xf32>
    %cst_15 = arith.constant 1.000000e+00 : f32
    %19 = vector.broadcast %cst_15 : f32 to vector<128x1xf32>
    %20 = arith.addf %19, %18 : vector<128x1xf32>
    %21 = tpu.reciprocal %20 : vector<128x1xf32> -> vector<128x1xf32>
    %22 = vector.broadcast %21 : vector<128x1xf32> to vector<128x256xf32>
    %23 = arith.mulf %1, %22 : vector<128x256xf32>
    %c0_16 = arith.constant 0 : index
    %c0_17 = arith.constant 0 : index
    %c0_18 = arith.constant 0 : index
    %24 = vector.load %arg6[%c0_16, %c0_17, %c0_18] : memref<1x128x256xf32, #tpu.memory_space<vmem>>, vector<1x128x256xf32>
    %25 = vector.shape_cast %24 : vector<1x128x256xf32> to vector<128x256xf32>
    %26 = vector.shape_cast %23 : vector<128x256xf32> to vector<1x128x256xf32>
    tpu.vector_store %arg6[%c0_16, %c0_17, %c0_18], %26 {strides = array<i32>} : memref<1x128x256xf32, #tpu.memory_space<vmem>>, vector<1x128x256xf32>,
    return
  }
  func.func @transform_0(%arg0: i32) -> (i32, i32, i32) {
    %c0_i32 = arith.constant 0 : i32
    %c0_i32_0 = arith.constant 0 : i32
    %c0_i32_1 = arith.constant 0 : i32
    return %arg0, %c0_i32, %c0_i32_0 : i32, i32, i32
  }
  func.func @transform_1(%arg0: i32) -> (i32, i32) {
    %c0_i32 = arith.constant 0 : i32
    %c0_i32_0 = arith.constant 0 : i32
    %c0_i32_1 = arith.constant 0 : i32
    return %c0_i32, %c0_i32_0 : i32, i32
  }
  func.func @transform_2(%arg0: i32) -> (i32, i32) {
    %c0_i32 = arith.constant 0 : i32
    %c0_i32_0 = arith.constant 0 : i32
    %c0_i32_1 = arith.constant 0 : i32
    return %c0_i32, %c0_i32_0 : i32, i32
  }
  func.func @transform_3(%arg0: i32) -> (i32, i32) {
    %c0_i32 = arith.constant 0 : i32
    %c0_i32_0 = arith.constant 0 : i32
    %c0_i32_1 = arith.constant 0 : i32
    return %c0_i32, %c0_i32_0 : i32, i32
  }
  func.func @transform_4(%arg0: i32) -> (i32, i32) {
    %c0_i32 = arith.constant 0 : i32
    %c0_i32_0 = arith.constant 0 : i32
    %c0_i32_1 = arith.constant 0 : i32
    return %c0_i32, %c0_i32_0 : i32, i32
  }
  func.func @transform_5(%arg0: i32) -> (i32, i32, i32) {
    %c0_i32 = arith.constant 0 : i32
    %c0_i32_0 = arith.constant 0 : i32
    %c0_i32_1 = arith.constant 0 : i32
    return %arg0, %c0_i32, %c0_i32_0 : i32, i32, i32
  }
}

</mosaic_0001>

<llo_original>
// kernel: tpu_custom_call.1
$region0: #{tpu_custom_call.1}
  #allocation0 [shape = 'u32[]', space=smem, size = 0x4, offset = 0x4, fixed_abs, tag = 'smem constant byte address 0x4 - core index']
  #allocation1 [shape = 'u32[72,128]{1,0:T(1,128)}', space=vmem, size = 0x9000, scoped, tag = 'internal scratch']
  %s0 = inlined_call_operand.hbm [shape: f32[2,128,256], index: 0, kind: input, shape index: {}]
  %s1 = inlined_call_operand.vmem [shape: f32[8,128], index: 1, kind: input, shape index: {}]
  %s2 = inlined_call_operand.vmem [shape: f32[8,1], index: 2, kind: input, shape index: {}]
  %s3 = inlined_call_operand.vmem [shape: f32[128,8], index: 3, kind: input, shape index: {}]
  %s4 = inlined_call_operand.vmem [shape: f32[128,1], index: 4, kind: input, shape index: {}]
  %s5 = inlined_call_operand.hbm [shape: f32[2,128,256], index: 5, kind: output, shape index: {}]
  %s6 = sld [smem:[#allocation0]]
  $region57: #{tpu_custom_call.1} parent=0
    _
  %s8 = ssub.s32 1, %s6
  %s9 = scalar_select 0, %s8, %s6
  $region1: #{tpu_custom_call.1} parent=0
    #allocation2 [shape = 'u8[262144]{0}', space=vmem, size = 0x40000, scoped, tag = 'input window, operand 0']
    #allocation3 [shape = 's32[2]{0}', space=sflag, size = 0x8, scoped, tag = 'scoped memory for tpu_custom_call.1']
    #allocation4 [shape = 's32[2]{0}', space=sflag, size = 0x8, scoped, tag = 'scoped memory for tpu_custom_call.1']
    #allocation5 [shape = 'u8[262144]{0}', space=vmem, size = 0x40000, scoped, tag = 'output window, operand 0']
    %10 = vsyncpa [#allocation3], 0
    %s11 = scalar_lea.sflag [#allocation3], 1
    %12 = vsyncpa %s11, 0
    %13 = vsyncpa [#allocation4], 0
    %s14 = scalar_lea.sflag [#allocation4], 1
    %15 = vsyncpa %s14, 0
    loop: start=0, step=1, limit=4
    $region2: #{tpu_custom_call.1} parent=1 // loop_pre_header
      _
    $region3: #{tpu_custom_call.1} parent=1 // loop_header
      %s17 = sphi 0, %s21
      %p18 = scmp.ge.s32.totalorder %s17, 4
      %s27 = sphi 0, %s29
      %s30 = sphi 0, %s27
      %s31 = sphi 0, %s30
      %s47 = sphi 0, %s31
      %s51 = sphi 0, %s51
      %s53 = sphi 0, %s51
      %s54 = sphi 0, %s53
      %s68 = sphi 0, %s54
      %s72 = sphi 0, %s72
      %s74 = sphi 0, %s72
      %s75 = sphi 0, %s74
      %s89 = sphi 0, %s75
      %s93 = sphi 0, %s93
      %s95 = sphi 0, %s93
      %s96 = sphi 0, %s95
      %s110 = sphi 0, %s96
      %s114 = sphi 0, %s114
      %s116 = sphi 0, %s114
      %s117 = sphi 0, %s116
      %s131 = sphi 0, %s117
      %s137 = sphi 0, %s139
      %s140 = sphi 0, %s137
      %s141 = sphi 0, %s140
      %s157 = sphi 0, %s141
    $region4: #{tpu_custom_call.1} parent=1 // loop_header_branch
      %20 = sbr.rel (%p18) target = $region8
    $region5: #{tpu_custom_call.1} parent=1 // loop_body
      %s22 = ssub.s32 %s17, 1
      %s23 = ssub.s32 %s17, 2
      %s24 = sadd.s32 %s17, 1
      %s25 = ssub.s32 %s17, %s24
      %p26 = scmp.eq.s32.totalorder %s25, 0
      %s28 = sadd.s32 %s27, 1
      %s29 = scalar_select %p26, %s27, %s28
      %p32 = pneg %p26
      %p33 = scmp.eq.s32.totalorder %s17, 1
      %p34 = por %p32, %p33
      %p35 = scmp.ne.s32.totalorder %s27, %s30
      %p36 = scmp.eq.s32.totalorder %s17, 0
      %p37 = por %p35, %p36
      %p38 = scmp.ne.s32.totalorder %s27, %s30
      %p39 = scmp.eq.s32.totalorder %s22, 1
      %p40 = por %p38, %p39
      %p41 = scmp.ne.s32.totalorder %s30, %s31
      %p42 = scmp.eq.s32.totalorder %s22, 0
      %p43 = por %p41, %p42
      %p44 = scmp.ne.s32.totalorder %s30, %s31
      %p45 = scmp.eq.s32.totalorder %s23, 1
      %p46 = por %p44, %p45
      %p48 = scmp.ne.s32.totalorder %s31, %s47
      %p49 = scmp.eq.s32.totalorder %s23, 0
      %p50 = por %p48, %p49
      %s52 = sadd.s32 %s51, 1
      %p55 = scmp.eq.s32.totalorder %s17, 1
      %p56 = scmp.ne.s32.totalorder %s51, %s53
      %p57 = scmp.eq.s32.totalorder %s17, 0
      %p58 = por %p56, %p57
      %p59 = scmp.ne.s32.totalorder %s51, %s53
      %p60 = scmp.eq.s32.totalorder %s22, 1
      %p61 = por %p59, %p60
      %p62 = scmp.ne.s32.totalorder %s53, %s54
      %p63 = scmp.eq.s32.totalorder %s22, 0
      %p64 = por %p62, %p63
      %p65 = scmp.ne.s32.totalorder %s53, %s54
      %p66 = scmp.eq.s32.totalorder %s23, 1
      %p67 = por %p65, %p66
      %p69 = scmp.ne.s32.totalorder %s54, %s68
      %p70 = scmp.eq.s32.totalorder %s23, 0
      %p71 = por %p69, %p70
      %s73 = sadd.s32 %s72, 1
      %p76 = scmp.eq.s32.totalorder %s17, 1
      %p77 = scmp.ne.s32.totalorder %s72, %s74
      %p78 = scmp.eq.s32.totalorder %s17, 0
      %p79 = por %p77, %p78
      %p80 = scmp.ne.s32.totalorder %s72, %s74
      %p81 = scmp.eq.s32.totalorder %s22, 1
      %p82 = por %p80, %p81
      %p83 = scmp.ne.s32.totalorder %s74, %s75
      %p84 = scmp.eq.s32.totalorder %s22, 0
      %p85 = por %p83, %p84
      %p86 = scmp.ne.s32.totalorder %s74, %s75
      %p87 = scmp.eq.s32.totalorder %s23, 1
      %p88 = por %p86, %p87
      %p90 = scmp.ne.s32.totalorder %s75, %s89
      %p91 = scmp.eq.s32.totalorder %s23, 0
      %p92 = por %p90, %p91
      %s94 = sadd.s32 %s93, 1
      %p97 = scmp.eq.s32.totalorder %s17, 1
      %p98 = scmp.ne.s32.totalorder %s93, %s95
      %p99 = scmp.eq.s32.totalorder %s17, 0
      %p100 = por %p98, %p99
      %p101 = scmp.ne.s32.totalorder %s93, %s95
      %p102 = scmp.eq.s32.totalorder %s22, 1
      %p103 = por %p101, %p102
      %p104 = scmp.ne.s32.totalorder %s95, %s96
      %p105 = scmp.eq.s32.totalorder %s22, 0
      %p106 = por %p104, %p105
      %p107 = scmp.ne.s32.totalorder %s95, %s96
      %p108 = scmp.eq.s32.totalorder %s23, 1
      %p109 = por %p107, %p108
      %p111 = scmp.ne.s32.totalorder %s96, %s110
      %p112 = scmp.eq.s32.totalorder %s23, 0
      %p113 = por %p111, %p112
      %s115 = sadd.s32 %s114, 1
      %p118 = scmp.eq.s32.totalorder %s17, 1
      %p119 = scmp.ne.s32.totalorder %s114, %s116
      %p120 = scmp.eq.s32.totalorder %s17, 0
      %p121 = por %p119, %p120
      %p122 = scmp.ne.s32.totalorder %s114, %s116
      %p123 = scmp.eq.s32.totalorder %s22, 1
      %p124 = por %p122, %p123
      %p125 = scmp.ne.s32.totalorder %s116, %s117
      %p126 = scmp.eq.s32.totalorder %s22, 0
      %p127 = por %p125, %p126
      %p128 = scmp.ne.s32.totalorder %s116, %s117
      %p129 = scmp.eq.s32.totalorder %s23, 1
      %p130 = por %p128, %p129
      %p132 = scmp.ne.s32.totalorder %s117, %s131
      %p133 = scmp.eq.s32.totalorder %s23, 0
      %p134 = por %p132, %p133
      %s135 = ssub.s32 %s17, %s24
      %p136 = scmp.eq.s32.totalorder %s135, 0
      %s138 = sadd.s32 %s137, 1
      %s139 = scalar_select %p136, %s137, %s138
      %p142 = pneg %p136
      %p143 = scmp.eq.s32.totalorder %s17, 1
      %p144 = por %p142, %p143
      %p145 = scmp.ne.s32.totalorder %s137, %s140
      %p146 = scmp.eq.s32.totalorder %s17, 0
      %p147 = por %p145, %p146
      %p148 = scmp.ne.s32.totalorder %s137, %s140
      %p149 = scmp.eq.s32.totalorder %s22, 1
      %p150 = por %p148, %p149
      %p151 = scmp.ne.s32.totalorder %s140, %s141
      %p152 = scmp.eq.s32.totalorder %s22, 0
      %p153 = por %p151, %p152
      %p154 = scmp.ne.s32.totalorder %s140, %s141
      %p155 = scmp.eq.s32.totalorder %s23, 1
      %p156 = por %p154, %p155
      %p158 = scmp.ne.s32.totalorder %s141, %s157
      %p159 = scmp.eq.s32.totalorder %s23, 0
      %p160 = por %p158, %p159
      %p161 = scmp.le.s32.totalorder 1, %s17
      %p162 = scmp.lt.s32.totalorder %s17, 3
      %p163 = pnand %p161, %p162
      %p164 = pneg %p163
      // Predicated region
      $region9: #{tpu_custom_call.1} parent=5 // pred_check
        _
      $region10: #{tpu_custom_call.1} parent=5 // pred_check_branch
        %166 = sbr.rel (%p163) target = $region12
      $region11: #{tpu_custom_call.1} parent=5 // pred_region
        %s167 = ssub.s32 %s17, 1
        // Predicated region
        $region13: #{tpu_custom_call.1} parent=11 // pred_check
          %p168 = pneg %p64
        $region14: #{tpu_custom_call.1} parent=11 // pred_check_branch
          %170 = sbr.rel (%p168) target = $region16
        $region15: #{tpu_custom_call.1} parent=11 // pred_region
          _
        $region16: #{tpu_custom_call.1} parent=11 // pred_fallthru
          _
        // Predicated region
        $region17: #{tpu_custom_call.1} parent=11 // pred_check
          %p171 = pneg %p85
        $region18: #{tpu_custom_call.1} parent=11 // pred_check_branch
          %173 = sbr.rel (%p171) target = $region20
        $region19: #{tpu_custom_call.1} parent=11 // pred_region
          _
        $region20: #{tpu_custom_call.1} parent=11 // pred_fallthru
          _
        // Predicated region
        $region21: #{tpu_custom_call.1} parent=11 // pred_check
          %p174 = pneg %p106
        $region22: #{tpu_custom_call.1} parent=11 // pred_check_branch
          %176 = sbr.rel (%p174) target = $region24
        $region23: #{tpu_custom_call.1} parent=11 // pred_region
          _
        $region24: #{tpu_custom_call.1} parent=11 // pred_fallthru
          _
        // Predicated region
        $region25: #{tpu_custom_call.1} parent=11 // pred_check
          %p177 = pneg %p127
        $region26: #{tpu_custom_call.1} parent=11 // pred_check_branch
          %179 = sbr.rel (%p177) target = $region28
        $region27: #{tpu_custom_call.1} parent=11 // pred_region
          _
        $region28: #{tpu_custom_call.1} parent=11 // pred_fallthru
          _
      $region12: #{tpu_custom_call.1} parent=5 // pred_fallthru
        _
      %p180 = scmp.lt.s32.totalorder %s17, 2
      // Predicated region
      $region29: #{tpu_custom_call.1} parent=5 // pred_check
        %p181 = pneg %p180
      $region30: #{tpu_custom_call.1} parent=5 // pred_check_branch
        %183 = sbr.rel (%p181) target = $region32
      $region31: #{tpu_custom_call.1} parent=5 // pred_region
        // Predicated region
        $region33: #{tpu_custom_call.1} parent=31 // pred_check
          %p184 = pneg %p37
        $region34: #{tpu_custom_call.1} parent=31 // pred_check_branch
          %186 = sbr.rel (%p184) target = $region36
        $region35: #{tpu_custom_call.1} parent=31 // pred_region
          %s187 = sand.u32 %s27, 1
          %s188 = scalar_lea.sflag [#allocation3], %s187
          %s189 = sand.u32 %s27, 1
          %s190 = smul.addr %s189, 256
          %s191 = scalar_lea.vmem [#allocation2], %s190
          %193 = vsyncadd %s188, 0
          %s194 = smul.addr %s17, 32
          %s195 = smul.addr %s194, 8
          %s196 = scalar_lea.hbm %s0, %s195
          %s197 = sshll.u32 %s196, 4
          %s198 = int_to_ptr.hbm [resolvable:$true] %s197
          %s199 = sshll.u32 %s191, 4
          %s200 = int_to_ptr.vmem [resolvable:$true] %s199
          %205 = dma.hbm_to_vmem [thread:$0]  %s198, 4096, %s200, %s188, 256, 256, 16
        $region36: #{tpu_custom_call.1} parent=31 // pred_fallthru
          _
      $region32: #{tpu_custom_call.1} parent=5 // pred_fallthru
        _
      %p206 = scmp.le.s32.totalorder 1, %s17
      %p207 = scmp.lt.s32.totalorder %s17, 3
      %p208 = pnand %p206, %p207
      %p209 = pneg %p208
      // Predicated region
      $region37: #{tpu_custom_call.1} parent=5 // pred_check
        _
      $region38: #{tpu_custom_call.1} parent=5 // pred_check_branch
        %211 = sbr.rel (%p208) target = $region40
      $region39: #{tpu_custom_call.1} parent=5 // pred_region
        %s212 = ssub.s32 %s17, 1
        %s213 = sand.u32 %s30, 1
        %s214 = scalar_lea.sflag [#allocation3], %s213
        %s215 = sand.u32 %s30, 1
        %s216 = smul.addr %s215, 256
        %s217 = scalar_lea.vmem [#allocation2], %s216
        // Predicated region
        $region41: #{tpu_custom_call.1} parent=39 // pred_check
          %p218 = pneg %p43
        $region42: #{tpu_custom_call.1} parent=39 // pred_check_branch
          %220 = sbr.rel (%p218) target = $region44
        $region43: #{tpu_custom_call.1} parent=39 // pred_region
          %222 = dma.done %s214, 4096
        $region44: #{tpu_custom_call.1} parent=39 // pred_fallthru
          _
        %s223 = sand.u32 %s30, 1
        %s224 = scalar_lea.sflag [#allocation3], %s223
        %s225 = sand.u32 %s30, 1
        %s226 = smul.addr %s225, 256
        %s227 = scalar_lea.vmem [#allocation2], %s226
        %p228 = pneg %p43
        %p229 = pneg %p40
        %p230 = pneg %p64
        %p231 = pneg %p61
        %p232 = pneg %p85
        %p233 = pneg %p82
        %p234 = pneg %p106
        %p235 = pneg %p103
        %p236 = pneg %p127
        %p237 = pneg %p124
        %p238 = pneg %p153
        %p239 = pneg %p150
        %s240 = sand.u32 %s140, 1
        %s241 = scalar_lea.sflag [#allocation4], %s240
        %s242 = sand.u32 %s140, 1
        %s243 = smul.addr %s242, 256
        %s244 = scalar_lea.vmem [#allocation5], %s243
        %v245 = vld [vmem:[%s217] sm:$0xff]
        %v246 = vld [vmem:[%s217 + $0x8] sm:$0xff]
        %v247 = vld [vmem:[%s217 + $0x10] sm:$0xff]
        %v248 = vld [vmem:[%s217 + $0x18] sm:$0xff]
        %v249 = vld [vmem:[%s217 + $0x20] sm:$0xff]
        %v250 = vld [vmem:[%s217 + $0x28] sm:$0xff]
        %v251 = vld [vmem:[%s217 + $0x30] sm:$0xff]
        %v252 = vld [vmem:[%s217 + $0x38] sm:$0xff]
        %v253 = vld [vmem:[%s217 + $0x40] sm:$0xff]
        %v254 = vld [vmem:[%s217 + $0x48] sm:$0xff]
        %v255 = vld [vmem:[%s217 + $0x50] sm:$0xff]
        %v256 = vld [vmem:[%s217 + $0x58] sm:$0xff]
        %v257 = vld [vmem:[%s217 + $0x60] sm:$0xff]
        %v258 = vld [vmem:[%s217 + $0x68] sm:$0xff]
        %v259 = vld [vmem:[%s217 + $0x70] sm:$0xff]
        %v260 = vld [vmem:[%s217 + $0x78] sm:$0xff]
        %v261 = vld [vmem:[%s217 + $0x80] sm:$0xff]
        %v262 = vld [vmem:[%s217 + $0x88] sm:$0xff]
        %v263 = vld [vmem:[%s217 + $0x90] sm:$0xff]
        %v264 = vld [vmem:[%s217 + $0x98] sm:$0xff]
        %v265 = vld [vmem:[%s217 + $0xa0] sm:$0xff]
        %v266 = vld [vmem:[%s217 + $0xa8] sm:$0xff]
        %v267 = vld [vmem:[%s217 + $0xb0] sm:$0xff]
        %v268 = vld [vmem:[%s217 + $0xb8] sm:$0xff]
        %v269 = vld [vmem:[%s217 + $0xc0] sm:$0xff]
        %v270 = vld [vmem:[%s217 + $0xc8] sm:$0xff]
        %v271 = vld [vmem:[%s217 + $0xd0] sm:$0xff]
        %v272 = vld [vmem:[%s217 + $0xd8] sm:$0xff]
        %v273 = vld [vmem:[%s217 + $0xe0] sm:$0xff]
        %v274 = vld [vmem:[%s217 + $0xe8] sm:$0xff]
        %v275 = vld [vmem:[%s217 + $0xf0] sm:$0xff]
        %v276 = vld [vmem:[%s217 + $0xf8] sm:$0xff]
        %v277 = vadd.f32 %v245, %v246
        %278 = vadd.xlane.f32.xlu0 %v277
        %v279 = vpop.xlane.xlu0 %278
        %v280 = vadd.f32 %v247, %v248
        %281 = vadd.xlane.f32.xlu0 %v280
        %v282 = vpop.xlane.xlu0 %281
        %v283 = vadd.f32 %v249, %v250
        %284 = vadd.xlane.f32.xlu0 %v283
        %v285 = vpop.xlane.xlu0 %284
        %v286 = vadd.f32 %v251, %v252
        %287 = vadd.xlane.f32.xlu0 %v286
        %v288 = vpop.xlane.xlu0 %287
        %v289 = vadd.f32 %v253, %v254
        %290 = vadd.xlane.f32.xlu0 %v289
        %v291 = vpop.xlane.xlu0 %290
        %v292 = vadd.f32 %v255, %v256
        %293 = vadd.xlane.f32.xlu0 %v292
        %v294 = vpop.xlane.xlu0 %293
        %v295 = vadd.f32 %v257, %v258
        %296 = vadd.xlane.f32.xlu0 %v295
        %v297 = vpop.xlane.xlu0 %296
        %v298 = vadd.f32 %v259, %v260
        %299 = vadd.xlane.f32.xlu0 %v298
        %v300 = vpop.xlane.xlu0 %299
        %v301 = vadd.f32 %v261, %v262
        %302 = vadd.xlane.f32.xlu0 %v301
        %v303 = vpop.xlane.xlu0 %302
        %v304 = vadd.f32 %v263, %v264
        %305 = vadd.xlane.f32.xlu0 %v304
        %v306 = vpop.xlane.xlu0 %305
        %v307 = vadd.f32 %v265, %v266
        %308 = vadd.xlane.f32.xlu0 %v307
        %v309 = vpop.xlane.xlu0 %308
        %v310 = vadd.f32 %v267, %v268
        %311 = vadd.xlane.f32.xlu0 %v310
        %v312 = vpop.xlane.xlu0 %311
        %v313 = vadd.f32 %v269, %v270
        %314 = vadd.xlane.f32.xlu0 %v313
        %v315 = vpop.xlane.xlu0 %314
        %v316 = vadd.f32 %v271, %v272
        %317 = vadd.xlane.f32.xlu0 %v316
        %v318 = vpop.xlane.xlu0 %317
        %v319 = vadd.f32 %v273, %v274
        %320 = vadd.xlane.f32.xlu0 %v319
        %v321 = vpop.xlane.xlu0 %320
        %v322 = vadd.f32 %v275, %v276
        %323 = vadd.xlane.f32.xlu0 %v322
        %v324 = vpop.xlane.xlu0 %323
        %v325 = vmul.f32 %v279, 0.00390625
        %v326 = vmul.f32 %v282, 0.00390625
        %v327 = vmul.f32 %v285, 0.00390625
        %v328 = vmul.f32 %v288, 0.00390625
        %v329 = vmul.f32 %v291, 0.00390625
        %v330 = vmul.f32 %v294, 0.00390625
        %v331 = vmul.f32 %v297, 0.00390625
        %v332 = vmul.f32 %v300, 0.00390625
        %v333 = vmul.f32 %v303, 0.00390625
        %v334 = vmul.f32 %v306, 0.00390625
        %v335 = vmul.f32 %v309, 0.00390625
        %v336 = vmul.f32 %v312, 0.00390625
        %v337 = vmul.f32 %v315, 0.00390625
        %v338 = vmul.f32 %v318, 0.00390625
        %v339 = vmul.f32 %v321, 0.00390625
        %v340 = vmul.f32 %v324, 0.00390625
        %v341 = vld [vmem:[%s1] sm:$0xff]
        %v342 = vld [vmem:[%s2] sm:$0xff]
        %343 = vmatpush.msra.mxu0 %v340
        %344 = vmatpush.msra.mxu0 %v339
        %345 = vmatpush.msra.mxu0 %v338
        %346 = vmatpush.msra.mxu0 %v337
        %347 = vmatpush.msra.mxu0 %v336
        %348 = vmatpush.msra.mxu0 %v335
        %349 = vmatpush.msra.mxu0 %v334
        %350 = vmatpush.msra.mxu0 %v333
        %351 = vmatpush.msra.mxu0 %v332
        %352 = vmatpush.msra.mxu0 %v331
        %353 = vmatpush.msra.mxu0 %v330
        %354 = vmatpush.msra.mxu0 %v329
        %355 = vmatpush.msra.mxu0 %v328
        %356 = vmatpush.msra.mxu0 %v327
        %357 = vmatpush.msra.mxu0 %v326
        %358 = vmatpush.msra.mxu0 %v325
        %359 = vmatmul.f32.gmra.mxu0 %v341
        %v360 = vpop.f32.mrf.mxu0
        %v361 = vadd.f32 %v342, %v360
        %362 = vdwg.mxu0
        %v363 = vmax.f32 %v361, 0.0
        %v364 = vld [vmem:[%s3] sm:$0xff]
        %v365 = vld [vmem:[%s3 + $0x8] sm:$0xff]
        %v366 = vld [vmem:[%s3 + $0x10] sm:$0xff]
        %v367 = vld [vmem:[%s3 + $0x18] sm:$0xff]
        %v368 = vld [vmem:[%s3 + $0x20] sm:$0xff]
        %v369 = vld [vmem:[%s3 + $0x28] sm:$0xff]
        %v370 = vld [vmem:[%s3 + $0x30] sm:$0xff]
        %v371 = vld [vmem:[%s3 + $0x38] sm:$0xff]
        %v372 = vld [vmem:[%s3 + $0x40] sm:$0xff]
        %v373 = vld [vmem:[%s3 + $0x48] sm:$0xff]
        %v374 = vld [vmem:[%s3 + $0x50] sm:$0xff]
        %v375 = vld [vmem:[%s3 + $0x58] sm:$0xff]
        %v376 = vld [vmem:[%s3 + $0x60] sm:$0xff]
        %v377 = vld [vmem:[%s3 + $0x68] sm:$0xff]
        %v378 = vld [vmem:[%s3 + $0x70] sm:$0xff]
        %v379 = vld [vmem:[%s3 + $0x78] sm:$0xff]
        %v380 = vld [vmem:[%s4] sm:$0xff]
        %v381 = vld [vmem:[%s4 + $0x8] sm:$0xff]
        %v382 = vld [vmem:[%s4 + $0x10] sm:$0xff]
        %v383 = vld [vmem:[%s4 + $0x18] sm:$0xff]
        %v384 = vld [vmem:[%s4 + $0x20] sm:$0xff]
        %v385 = vld [vmem:[%s4 + $0x28] sm:$0xff]
        %v386 = vld [vmem:[%s4 + $0x30] sm:$0xff]
        %v387 = vld [vmem:[%s4 + $0x38] sm:$0xff]
        %v388 = vld [vmem:[%s4 + $0x40] sm:$0xff]
        %v389 = vld [vmem:[%s4 + $0x48] sm:$0xff]
        %v390 = vld [vmem:[%s4 + $0x50] sm:$0xff]
        %v391 = vld [vmem:[%s4 + $0x58] sm:$0xff]
        %v392 = vld [vmem:[%s4 + $0x60] sm:$0xff]
        %v393 = vld [vmem:[%s4 + $0x68] sm:$0xff]
        %v394 = vld [vmem:[%s4 + $0x70] sm:$0xff]
        %v395 = vld [vmem:[%s4 + $0x78] sm:$0xff]
        %vm396 = vcmask 64512
        %v398 = vsel %vm396, %v364, 0
        %v401 = vsel %vm396, %v365, 0
        %v404 = vsel %vm396, %v366, 0
        %v407 = vsel %vm396, %v367, 0
        %v410 = vsel %vm396, %v368, 0
        %v413 = vsel %vm396, %v369, 0
        %v416 = vsel %vm396, %v370, 0
        %v419 = vsel %vm396, %v371, 0
        %v422 = vsel %vm396, %v372, 0
        %v425 = vsel %vm396, %v373, 0
        %v428 = vsel %vm396, %v374, 0
        %v431 = vsel %vm396, %v375, 0
        %v434 = vsel %vm396, %v376, 0
        %v437 = vsel %vm396, %v377, 0
        %v440 = vsel %vm396, %v378, 0
        %v443 = vsel %vm396, %v379, 0
        %445 = vmatpush.msra.mxu0 0.0
        %446 = vmatpush.msra.mxu0 0.0
        %447 = vmatpush.msra.mxu0 0.0
        %448 = vmatpush.msra.mxu0 0.0
        %449 = vmatpush.msra.mxu0 0.0
        %450 = vmatpush.msra.mxu0 0.0
        %451 = vmatpush.msra.mxu0 0.0
        %452 = vmatpush.msra.mxu0 0.0
        %453 = vmatpush.msra.mxu0 0.0
        %454 = vmatpush.msra.mxu0 0.0
        %455 = vmatpush.msra.mxu0 0.0
        %456 = vmatpush.msra.mxu0 0.0
        %457 = vmatpush.msra.mxu0 0.0
        %458 = vmatpush.msra.mxu0 0.0
        %459 = vmatpush.msra.mxu0 0.0
        %460 = vmatpush.msra.mxu0 %v363
        %461 = vmatmul.f32.gmra.mxu0 %v398
        %v462 = vpop.f32.mrf.mxu0
        %v463 = vadd.f32 %v380, %v462
        %464 = vmatmul.f32.gmra.mxu0 %v401
        %v465 = vpop.f32.mrf.mxu0
        %v466 = vadd.f32 %v381, %v465
        %467 = vmatmul.f32.gmra.mxu0 %v404
        %v468 = vpop.f32.mrf.mxu0
        %v469 = vadd.f32 %v382, %v468
        %470 = vmatmul.f32.gmra.mxu0 %v407
        %v471 = vpop.f32.mrf.mxu0
        %v472 = vadd.f32 %v383, %v471
        %473 = vmatmul.f32.gmra.mxu0 %v410
        %v474 = vpop.f32.mrf.mxu0
        %v475 = vadd.f32 %v384, %v474
        %476 = vmatmul.f32.gmra.mxu0 %v413
        %v477 = vpop.f32.mrf.mxu0
        %v478 = vadd.f32 %v385, %v477
        %479 = vmatmul.f32.gmra.mxu0 %v416
        %v480 = vpop.f32.mrf.mxu0
        %v481 = vadd.f32 %v386, %v480
        %482 = vmatmul.f32.gmra.mxu0 %v419
        %v483 = vpop.f32.mrf.mxu0
        %v484 = vadd.f32 %v387, %v483
        %485 = vmatmul.f32.gmra.mxu0 %v422
        %v486 = vpop.f32.mrf.mxu0
        %v487 = vadd.f32 %v388, %v486
        %488 = vmatmul.f32.gmra.mxu0 %v425
        %v489 = vpop.f32.mrf.mxu0
        %v490 = vadd.f32 %v389, %v489
        %491 = vmatmul.f32.gmra.mxu0 %v428
        %v492 = vpop.f32.mrf.mxu0
        %v493 = vadd.f32 %v390, %v492
        %494 = vmatmul.f32.gmra.mxu0 %v431
        %v495 = vpop.f32.mrf.mxu0
        %v496 = vadd.f32 %v391, %v495
        %497 = vmatmul.f32.gmra.mxu0 %v434
        %v498 = vpop.f32.mrf.mxu0
        %v499 = vadd.f32 %v392, %v498
        %500 = vmatmul.f32.gmra.mxu0 %v437
        %v501 = vpop.f32.mrf.mxu0
        %v502 = vadd.f32 %v393, %v501
        %503 = vmatmul.f32.gmra.mxu0 %v440
        %v504 = vpop.f32.mrf.mxu0
        %v505 = vadd.f32 %v394, %v504
        %506 = vmatmul.f32.gmra.mxu0 %v443
        %v507 = vpop.f32.mrf.mxu0
        %v508 = vadd.f32 %v395, %v507
        %509 = vdwg.mxu0
        %v510 = vsub.f32 0.0, %v463
        %v511 = vsub.f32 0.0, %v466
        %v512 = vsub.f32 0.0, %v469
        %v513 = vsub.f32 0.0, %v472
        %v514 = vsub.f32 0.0, %v475
        %v515 = vsub.f32 0.0, %v478
        %v516 = vsub.f32 0.0, %v481
        %v517 = vsub.f32 0.0, %v484
        %v518 = vsub.f32 0.0, %v487
        %v519 = vsub.f32 0.0, %v490
        %v520 = vsub.f32 0.0, %v493
        %v521 = vsub.f32 0.0, %v496
        %v522 = vsub.f32 0.0, %v499
        %v523 = vsub.f32 0.0, %v502
        %v524 = vsub.f32 0.0, %v505
        %v525 = vsub.f32 0.0, %v508
        %v526 = vmul.f32 %v510, 1.442695
        %v527 = vpow.pop %v526
        %v528 = vmul.f32 %v511, 1.442695
        %v529 = vpow.pop %v528
        %v530 = vmul.f32 %v512, 1.442695
        %v531 = vpow.pop %v530
        %v532 = vmul.f32 %v513, 1.442695
        %v533 = vpow.pop %v532
        %v534 = vmul.f32 %v514, 1.442695
        %v535 = vpow.pop %v534
        %v536 = vmul.f32 %v515, 1.442695
        %v537 = vpow.pop %v536
        %v538 = vmul.f32 %v516, 1.442695
        %v539 = vpow.pop %v538
        %v540 = vmul.f32 %v517, 1.442695
        %v541 = vpow.pop %v540
        %v542 = vmul.f32 %v518, 1.442695
        %v543 = vpow.pop %v542
        %v544 = vmul.f32 %v519, 1.442695
        %v545 = vpow.pop %v544
        %v546 = vmul.f32 %v520, 1.442695
        %v547 = vpow.pop %v546
        %v548 = vmul.f32 %v521, 1.442695
        %v549 = vpow.pop %v548
        %v550 = vmul.f32 %v522, 1.442695
        %v551 = vpow.pop %v550
        %v552 = vmul.f32 %v523, 1.442695
        %v553 = vpow.pop %v552
        %v554 = vmul.f32 %v524, 1.442695
        %v555 = vpow.pop %v554
        %v556 = vmul.f32 %v525, 1.442695
        %v557 = vpow.pop %v556
        %v558 = vadd.f32 %v527, 1.0
        %v559 = vadd.f32 %v529, 1.0
        %v560 = vadd.f32 %v531, 1.0
        %v561 = vadd.f32 %v533, 1.0
        %v562 = vadd.f32 %v535, 1.0
        %v563 = vadd.f32 %v537, 1.0
        %v564 = vadd.f32 %v539, 1.0
        %v565 = vadd.f32 %v541, 1.0
        %v566 = vadd.f32 %v543, 1.0
        %v567 = vadd.f32 %v545, 1.0
        %v568 = vadd.f32 %v547, 1.0
        %v569 = vadd.f32 %v549, 1.0
        %v570 = vadd.f32 %v551, 1.0
        %v571 = vadd.f32 %v553, 1.0
        %v572 = vadd.f32 %v555, 1.0
        %v573 = vadd.f32 %v557, 1.0
        %v574 = vrcp.pop %v558
        %v575 = vmul.f32 %v558, %v574
        %v576 = vsub.f32 1.0, %v575
        %v577 = vmul.f32 %v574, %v576
        %v578 = vadd.f32 %v574, %v577
        %vm579 = vweird.f32 %v558
        %vm580 = vweird.f32 %v574
        %vm581 = vmor %vm579, %vm580
        %v582 = vsel %vm581, %v574, %v578
        %v583 = vand.u32 2147483647, %v558
        %vm584 = vcmp.eq.f32.partialorder %v583, 8.507059e+37
        %v585 = vand.u32 %v558, 2147483648
        %v586 = vor.u32 1.1754944e-38, %v585
        %v587 = vsel %vm584, %v586, %v582
        %v588 = vrcp.pop %v559
        %v589 = vmul.f32 %v559, %v588
        %v590 = vsub.f32 1.0, %v589
        %v591 = vmul.f32 %v588, %v590
        %v592 = vadd.f32 %v588, %v591
        %vm593 = vweird.f32 %v559
        %vm594 = vweird.f32 %v588
        %vm595 = vmor %vm593, %vm594
        %v596 = vsel %vm595, %v588, %v592
        %v597 = vand.u32 2147483647, %v559
        %vm598 = vcmp.eq.f32.partialorder %v597, 8.507059e+37
        %v599 = vand.u32 %v559, 2147483648
        %v600 = vor.u32 1.1754944e-38, %v599
        %v601 = vsel %vm598, %v600, %v596
        %v602 = vrcp.pop %v560
        %v603 = vmul.f32 %v560, %v602
        %v604 = vsub.f32 1.0, %v603
        %v605 = vmul.f32 %v602, %v604
        %v606 = vadd.f32 %v602, %v605
        %vm607 = vweird.f32 %v560
        %vm608 = vweird.f32 %v602
        %vm609 = vmor %vm607, %vm608
        %v610 = vsel %vm609, %v602, %v606
        %v611 = vand.u32 2147483647, %v560
        %vm612 = vcmp.eq.f32.partialorder %v611, 8.507059e+37
        %v613 = vand.u32 %v560, 2147483648
        %v614 = vor.u32 1.1754944e-38, %v613
        %v615 = vsel %vm612, %v614, %v610
        %v616 = vrcp.pop %v561
        %v617 = vmul.f32 %v561, %v616
        %v618 = vsub.f32 1.0, %v617
        %v619 = vmul.f32 %v616, %v618
        %v620 = vadd.f32 %v616, %v619
        %vm621 = vweird.f32 %v561
        %vm622 = vweird.f32 %v616
        %vm623 = vmor %vm621, %vm622
        %v624 = vsel %vm623, %v616, %v620
        %v625 = vand.u32 2147483647, %v561
        %vm626 = vcmp.eq.f32.partialorder %v625, 8.507059e+37
        %v627 = vand.u32 %v561, 2147483648
        %v628 = vor.u32 1.1754944e-38, %v627
        %v629 = vsel %vm626, %v628, %v624
        %v630 = vrcp.pop %v562
        %v631 = vmul.f32 %v562, %v630
        %v632 = vsub.f32 1.0, %v631
        %v633 = vmul.f32 %v630, %v632
        %v634 = vadd.f32 %v630, %v633
        %vm635 = vweird.f32 %v562
        %vm636 = vweird.f32 %v630
        %vm637 = vmor %vm635, %vm636
        %v638 = vsel %vm637, %v630, %v634
        %v639 = vand.u32 2147483647, %v562
        %vm640 = vcmp.eq.f32.partialorder %v639, 8.507059e+37
        %v641 = vand.u32 %v562, 2147483648
        %v642 = vor.u32 1.1754944e-38, %v641
        %v643 = vsel %vm640, %v642, %v638
        %v644 = vrcp.pop %v563
        %v645 = vmul.f32 %v563, %v644
        %v646 = vsub.f32 1.0, %v645
        %v647 = vmul.f32 %v644, %v646
        %v648 = vadd.f32 %v644, %v647
        %vm649 = vweird.f32 %v563
        %vm650 = vweird.f32 %v644
        %vm651 = vmor %vm649, %vm650
        %v652 = vsel %vm651, %v644, %v648
        %v653 = vand.u32 2147483647, %v563
        %vm654 = vcmp.eq.f32.partialorder %v653, 8.507059e+37
        %v655 = vand.u32 %v563, 2147483648
        %v656 = vor.u32 1.1754944e-38, %v655
        %v657 = vsel %vm654, %v656, %v652
        %v658 = vrcp.pop %v564
        %v659 = vmul.f32 %v564, %v658
        %v660 = vsub.f32 1.0, %v659
        %v661 = vmul.f32 %v658, %v660
        %v662 = vadd.f32 %v658, %v661
        %vm663 = vweird.f32 %v564
        %vm664 = vweird.f32 %v658
        %vm665 = vmor %vm663, %vm664
        %v666 = vsel %vm665, %v658, %v662
        %v667 = vand.u32 2147483647, %v564
        %vm668 = vcmp.eq.f32.partialorder %v667, 8.507059e+37
        %v669 = vand.u32 %v564, 2147483648
        %v670 = vor.u32 1.1754944e-38, %v669
        %v671 = vsel %vm668, %v670, %v666
        %v672 = vrcp.pop %v565
        %v673 = vmul.f32 %v565, %v672
        %v674 = vsub.f32 1.0, %v673
        %v675 = vmul.f32 %v672, %v674
        %v676 = vadd.f32 %v672, %v675
        %vm677 = vweird.f32 %v565
        %vm678 = vweird.f32 %v672
        %vm679 = vmor %vm677, %vm678
        %v680 = vsel %vm679, %v672, %v676
        %v681 = vand.u32 2147483647, %v565
        %vm682 = vcmp.eq.f32.partialorder %v681, 8.507059e+37
        %v683 = vand.u32 %v565, 2147483648
        %v684 = vor.u32 1.1754944e-38, %v683
        %v685 = vsel %vm682, %v684, %v680
        %v686 = vrcp.pop %v566
        %v687 = vmul.f32 %v566, %v686
        %v688 = vsub.f32 1.0, %v687
        %v689 = vmul.f32 %v686, %v688
        %v690 = vadd.f32 %v686, %v689
        %vm691 = vweird.f32 %v566
        %vm692 = vweird.f32 %v686
        %vm693 = vmor %vm691, %vm692
        %v694 = vsel %vm693, %v686, %v690
        %v695 = vand.u32 2147483647, %v566
        %vm696 = vcmp.eq.f32.partialorder %v695, 8.507059e+37
        %v697 = vand.u32 %v566, 2147483648
        %v698 = vor.u32 1.1754944e-38, %v697
        %v699 = vsel %vm696, %v698, %v694
        %v700 = vrcp.pop %v567
        %v701 = vmul.f32 %v567, %v700
        %v702 = vsub.f32 1.0, %v701
        %v703 = vmul.f32 %v700, %v702
        %v704 = vadd.f32 %v700, %v703
        %vm705 = vweird.f32 %v567
        %vm706 = vweird.f32 %v700
        %vm707 = vmor %vm705, %vm706
        %v708 = vsel %vm707, %v700, %v704
        %v709 = vand.u32 2147483647, %v567
        %vm710 = vcmp.eq.f32.partialorder %v709, 8.507059e+37
        %v711 = vand.u32 %v567, 2147483648
        %v712 = vor.u32 1.1754944e-38, %v711
        %v713 = vsel %vm710, %v712, %v708
        %v714 = vrcp.pop %v568
        %v715 = vmul.f32 %v568, %v714
        %v716 = vsub.f32 1.0, %v715
        %v717 = vmul.f32 %v714, %v716
        %v718 = vadd.f32 %v714, %v717
        %vm719 = vweird.f32 %v568
        %vm720 = vweird.f32 %v714
        %vm721 = vmor %vm719, %vm720
        %v722 = vsel %vm721, %v714, %v718
        %v723 = vand.u32 2147483647, %v568
        %vm724 = vcmp.eq.f32.partialorder %v723, 8.507059e+37
        %v725 = vand.u32 %v568, 2147483648
        %v726 = vor.u32 1.1754944e-38, %v725
        %v727 = vsel %vm724, %v726, %v722
        %v728 = vrcp.pop %v569
        %v729 = vmul.f32 %v569, %v728
        %v730 = vsub.f32 1.0, %v729
        %v731 = vmul.f32 %v728, %v730
        %v732 = vadd.f32 %v728, %v731
        %vm733 = vweird.f32 %v569
        %vm734 = vweird.f32 %v728
        %vm735 = vmor %vm733, %vm734
        %v736 = vsel %vm735, %v728, %v732
        %v737 = vand.u32 2147483647, %v569
        %vm738 = vcmp.eq.f32.partialorder %v737, 8.507059e+37
        %v739 = vand.u32 %v569, 2147483648
        %v740 = vor.u32 1.1754944e-38, %v739
        %v741 = vsel %vm738, %v740, %v736
        %v742 = vrcp.pop %v570
        %v743 = vmul.f32 %v570, %v742
        %v744 = vsub.f32 1.0, %v743
        %v745 = vmul.f32 %v742, %v744
        %v746 = vadd.f32 %v742, %v745
        %vm747 = vweird.f32 %v570
        %vm748 = vweird.f32 %v742
        %vm749 = vmor %vm747, %vm748
        %v750 = vsel %vm749, %v742, %v746
        %v751 = vand.u32 2147483647, %v570
        %vm752 = vcmp.eq.f32.partialorder %v751, 8.507059e+37
        %v753 = vand.u32 %v570, 2147483648
        %v754 = vor.u32 1.1754944e-38, %v753
        %v755 = vsel %vm752, %v754, %v750
        %v756 = vrcp.pop %v571
        %v757 = vmul.f32 %v571, %v756
        %v758 = vsub.f32 1.0, %v757
        %v759 = vmul.f32 %v756, %v758
        %v760 = vadd.f32 %v756, %v759
        %vm761 = vweird.f32 %v571
        %vm762 = vweird.f32 %v756
        %vm763 = vmor %vm761, %vm762
        %v764 = vsel %vm763, %v756, %v760
        %v765 = vand.u32 2147483647, %v571
        %vm766 = vcmp.eq.f32.partialorder %v765, 8.507059e+37
        %v767 = vand.u32 %v571, 2147483648
        %v768 = vor.u32 1.1754944e-38, %v767
        %v769 = vsel %vm766, %v768, %v764
        %v770 = vrcp.pop %v572
        %v771 = vmul.f32 %v572, %v770
        %v772 = vsub.f32 1.0, %v771
        %v773 = vmul.f32 %v770, %v772
        %v774 = vadd.f32 %v770, %v773
        %vm775 = vweird.f32 %v572
        %vm776 = vweird.f32 %v770
        %vm777 = vmor %vm775, %vm776
        %v778 = vsel %vm777, %v770, %v774
        %v779 = vand.u32 2147483647, %v572
        %vm780 = vcmp.eq.f32.partialorder %v779, 8.507059e+37
        %v781 = vand.u32 %v572, 2147483648
        %v782 = vor.u32 1.1754944e-38, %v781
        %v783 = vsel %vm780, %v782, %v778
        %v784 = vrcp.pop %v573
        %v785 = vmul.f32 %v573, %v784
        %v786 = vsub.f32 1.0, %v785
        %v787 = vmul.f32 %v784, %v786
        %v788 = vadd.f32 %v784, %v787
        %vm789 = vweird.f32 %v573
        %vm790 = vweird.f32 %v784
        %vm791 = vmor %vm789, %vm790
        %v792 = vsel %vm791, %v784, %v788
        %v793 = vand.u32 2147483647, %v573
        %vm794 = vcmp.eq.f32.partialorder %v793, 8.507059e+37
        %v795 = vand.u32 %v573, 2147483648
        %v796 = vor.u32 1.1754944e-38, %v795
        %v797 = vsel %vm794, %v796, %v792
        %799 = vset.pattern.permute.xlu0 0
        %800 = vperm.xlu0 %799, %v587
        %v801 = vpop.permute.xlu0 %800
        %804 = vset.pattern.permute.xlu0 0
        %805 = vperm.xlu0 %804, %v601
        %v806 = vpop.permute.xlu0 %805
        %809 = vset.pattern.permute.xlu0 0
        %810 = vperm.xlu0 %809, %v615
        %v811 = vpop.permute.xlu0 %810
        %814 = vset.pattern.permute.xlu0 0
        %815 = vperm.xlu0 %814, %v629
        %v816 = vpop.permute.xlu0 %815
        %819 = vset.pattern.permute.xlu0 0
        %820 = vperm.xlu0 %819, %v643
        %v821 = vpop.permute.xlu0 %820
        %824 = vset.pattern.permute.xlu0 0
        %825 = vperm.xlu0 %824, %v657
        %v826 = vpop.permute.xlu0 %825
        %829 = vset.pattern.permute.xlu0 0
        %830 = vperm.xlu0 %829, %v671
        %v831 = vpop.permute.xlu0 %830
        %834 = vset.pattern.permute.xlu0 0
        %835 = vperm.xlu0 %834, %v685
        %v836 = vpop.permute.xlu0 %835
        %839 = vset.pattern.permute.xlu0 0
        %840 = vperm.xlu0 %839, %v699
        %v841 = vpop.permute.xlu0 %840
        %844 = vset.pattern.permute.xlu0 0
        %845 = vperm.xlu0 %844, %v713
        %v846 = vpop.permute.xlu0 %845
        %849 = vset.pattern.permute.xlu0 0
        %850 = vperm.xlu0 %849, %v727
        %v851 = vpop.permute.xlu0 %850
        %854 = vset.pattern.permute.xlu0 0
        %855 = vperm.xlu0 %854, %v741
        %v856 = vpop.permute.xlu0 %855
        %859 = vset.pattern.permute.xlu0 0
        %860 = vperm.xlu0 %859, %v755
        %v861 = vpop.permute.xlu0 %860
        %864 = vset.pattern.permute.xlu0 0
        %865 = vperm.xlu0 %864, %v769
        %v866 = vpop.permute.xlu0 %865
        %869 = vset.pattern.permute.xlu0 0
        %870 = vperm.xlu0 %869, %v783
        %v871 = vpop.permute.xlu0 %870
        %874 = vset.pattern.permute.xlu0 0
        %875 = vperm.xlu0 %874, %v797
        %v876 = vpop.permute.xlu0 %875
        %v878 = vmul.f32 %v245, %v801
        %v879 = vmul.f32 %v246, %v801
        %v880 = vmul.f32 %v247, %v806
        %v881 = vmul.f32 %v248, %v806
        %v882 = vmul.f32 %v249, %v811
        %v883 = vmul.f32 %v250, %v811
        %v884 = vmul.f32 %v251, %v816
        %v885 = vmul.f32 %v252, %v816
        %v886 = vmul.f32 %v253, %v821
        %v887 = vmul.f32 %v254, %v821
        %v888 = vmul.f32 %v255, %v826
        %v889 = vmul.f32 %v256, %v826
        %v890 = vmul.f32 %v257, %v831
        %v891 = vmul.f32 %v258, %v831
        %v892 = vmul.f32 %v259, %v836
        %v893 = vmul.f32 %v260, %v836
        %v894 = vmul.f32 %v261, %v841
        %v895 = vmul.f32 %v262, %v841
        %v896 = vmul.f32 %v263, %v846
        %v897 = vmul.f32 %v264, %v846
        %v898 = vmul.f32 %v265, %v851
        %v899 = vmul.f32 %v266, %v851
        %v900 = vmul.f32 %v267, %v856
        %v901 = vmul.f32 %v268, %v856
        %v902 = vmul.f32 %v269, %v861
        %v903 = vmul.f32 %v270, %v861
        %v904 = vmul.f32 %v271, %v866
        %v905 = vmul.f32 %v272, %v866
        %v906 = vmul.f32 %v273, %v871
        %v907 = vmul.f32 %v274, %v871
        %v908 = vmul.f32 %v275, %v876
        %v909 = vmul.f32 %v276, %v876
        %910 = vst [vmem:[%s244] sm:$0xff] %v878
        %911 = vst [vmem:[%s244 + $0x8] sm:$0xff] %v879
        %912 = vst [vmem:[%s244 + $0x10] sm:$0xff] %v880
        %913 = vst [vmem:[%s244 + $0x18] sm:$0xff] %v881
        %914 = vst [vmem:[%s244 + $0x20] sm:$0xff] %v882
        %915 = vst [vmem:[%s244 + $0x28] sm:$0xff] %v883
        %916 = vst [vmem:[%s244 + $0x30] sm:$0xff] %v884
        %917 = vst [vmem:[%s244 + $0x38] sm:$0xff] %v885
        %918 = vst [vmem:[%s244 + $0x40] sm:$0xff] %v886
        %919 = vst [vmem:[%s244 + $0x48] sm:$0xff] %v887
        %920 = vst [vmem:[%s244 + $0x50] sm:$0xff] %v888
        %921 = vst [vmem:[%s244 + $0x58] sm:$0xff] %v889
        %922 = vst [vmem:[%s244 + $0x60] sm:$0xff] %v890
        %923 = vst [vmem:[%s244 + $0x68] sm:$0xff] %v891
        %924 = vst [vmem:[%s244 + $0x70] sm:$0xff] %v892
        %925 = vst [vmem:[%s244 + $0x78] sm:$0xff] %v893
        %926 = vst [vmem:[%s244 + $0x80] sm:$0xff] %v894
        %927 = vst [vmem:[%s244 + $0x88] sm:$0xff] %v895
        %928 = vst [vmem:[%s244 + $0x90] sm:$0xff] %v896
        %929 = vst [vmem:[%s244 + $0x98] sm:$0xff] %v897
        %930 = vst [vmem:[%s244 + $0xa0] sm:$0xff] %v898
        %931 = vst [vmem:[%s244 + $0xa8] sm:$0xff] %v899
        %932 = vst [vmem:[%s244 + $0xb0] sm:$0xff] %v900
        %933 = vst [vmem:[%s244 + $0xb8] sm:$0xff] %v901
        %934 = vst [vmem:[%s244 + $0xc0] sm:$0xff] %v902
        %935 = vst [vmem:[%s244 + $0xc8] sm:$0xff] %v903
        %936 = vst [vmem:[%s244 + $0xd0] sm:$0xff] %v904
        %937 = vst [vmem:[%s244 + $0xd8] sm:$0xff] %v905
        %938 = vst [vmem:[%s244 + $0xe0] sm:$0xff] %v906
        %939 = vst [vmem:[%s244 + $0xe8] sm:$0xff] %v907
        %940 = vst [vmem:[%s244 + $0xf0] sm:$0xff] %v908
        %941 = vst [vmem:[%s244 + $0xf8] sm:$0xff] %v909
        %s942 = sand.u32 %s140, 1
        %s943 = scalar_lea.sflag [#allocation4], %s942
        %s944 = sand.u32 %s140, 1
        %s945 = smul.addr %s944, 256
        %s946 = scalar_lea.vmem [#allocation5], %s945
        // Predicated region
        $region45: #{tpu_custom_call.1} parent=39 // pred_check
          %p947 = pneg %p150
        $region46: #{tpu_custom_call.1} parent=39 // pred_check_branch
          %949 = sbr.rel (%p947) target = $region48
        $region47: #{tpu_custom_call.1} parent=39 // pred_region
          %951 = vsyncadd %s943, 0
          %s952 = smul.addr %s22, 32
          %s953 = smul.addr %s952, 8
          %s954 = scalar_lea.hbm %s5, %s953
          %s955 = sshll.u32 %s946, 4
          %s956 = int_to_ptr.vmem [resolvable:$true] %s955
          %s957 = sshll.u32 %s954, 4
          %s958 = int_to_ptr.hbm [resolvable:$true] %s957
          %963 = dma.vmem_to_hbm [thread:$0]  %s956, 4096, %s958, %s943, 256, 256, 16
        $region48: #{tpu_custom_call.1} parent=39 // pred_fallthru
          _
      $region40: #{tpu_custom_call.1} parent=5 // pred_fallthru
        _
      %p964 = scmp.le.s32.totalorder 2, %s17
      // Predicated region
      $region49: #{tpu_custom_call.1} parent=5 // pred_check
        %p965 = pneg %p964
      $region50: #{tpu_custom_call.1} parent=5 // pred_check_branch
        %967 = sbr.rel (%p965) target = $region52
      $region51: #{tpu_custom_call.1} parent=5 // pred_region
        %s968 = ssub.s32 %s17, 2
        // Predicated region
        $region53: #{tpu_custom_call.1} parent=51 // pred_check
          %p969 = pneg %p156
        $region54: #{tpu_custom_call.1} parent=51 // pred_check_branch
          %971 = sbr.rel (%p969) target = $region56
        $region55: #{tpu_custom_call.1} parent=51 // pred_region
          %s972 = sand.u32 %s141, 1
          %s973 = scalar_lea.sflag [#allocation4], %s972
          %s974 = sand.u32 %s141, 1
          %s975 = smul.addr %s974, 256
          %s976 = scalar_lea.vmem [#allocation5], %s975
          %978 = dma.done %s973, 4096
        $region56: #{tpu_custom_call.1} parent=51 // pred_fallthru
          _
      $region52: #{tpu_custom_call.1} parent=5 // pred_fallthru
        _
    $region6: #{tpu_custom_call.1} parent=1 // loop_footer
      %s21 = sadd.s32 1, %s17
    $region7: #{tpu_custom_call.1} parent=1 // loop_footer_branch
      %16 = sbr.rel target = $region3
    $region8: #{tpu_custom_call.1} parent=1 // loop_exit
      _
    %979 = vsyncpa [#allocation3], 1
    %s980 = scalar_lea.sflag [#allocation3], 1
    %981 = vsyncpa %s980, 1
    %982 = vsyncpa [#allocation4], 1
    %s983 = scalar_lea.sflag [#allocation4], 1
    %984 = vsyncpa %s983, 1

</llo_original>
